<compile_context>
chip_gen: v5e
topology: v5e:2x2
jax: 0.10.0
libtpu: 0.0.40
codegen_flags: <defaults>
</compile_context>

<pallas_src>
import functools

import jax
import jax.numpy as jnp
from jax import lax
from jax.experimental import pallas as pl
from jax.experimental.pallas import tpu as pltpu


def _round_up(x: int, m: int) -> int:
    return ((x + m - 1) // m) * m


def _sublane_pack(*dtypes) -> int:
    # Packed sublane tile height: 8 rows for 4-byte, 16 for 2-byte, 32 for 1-byte.
    return max(max(8, 32 // jnp.dtype(d).itemsize) for d in dtypes)


# 48 MiB scoped VMEM: leaves headroom on v7x (64 MiB physical per TC), plenty
# on v5e/v6e (128 MiB).  Tiles are budgeted well below this.
_VMEM_LIMIT = 48 << 20
_VMEM_TILE_BUDGET = 40 << 20


def _linear_kernel_f32_out(xt_ref, w_ref, b_ref, o_ref):
    """f32 output: accumulate directly into the resident output tile.

    xt_ref : (tm, tk)  slice of x.T          (batch rows, in features)
    w_ref  : (tn, tk)  slice of weight       (NATIVE (O, I) layout)
    b_ref  : (1,  tn)  slice of bias row
    o_ref  : (tm, tn)  f32 output tile (block index constant across k -> resident)
    """
    k = pl.program_id(2)
    partial = lax.dot_general(
        xt_ref[...], w_ref[...],
        dimension_numbers=(((1,), (1,)), ((), ())),   # x_tile @ w_tile.T on the MXU
        preferred_element_type=jnp.float32,
    )

    @pl.when(k == 0)
    def _():
        o_ref[...] = partial                          # no zero-fill + RMW

    @pl.when(k != 0)
    def _():
        o_ref[...] += partial

    @pl.when(k == pl.num_programs(2) - 1)
    def _():
        o_ref[...] += b_ref[...].astype(jnp.float32)  # bias added exactly once


def _linear_kernel_acc(xt_ref, w_ref, b_ref, o_ref, acc_ref):
    """Narrow output dtype (e.g. bf16): f32 VMEM accumulator, single final cast."""
    k = pl.program_id(2)
    partial = lax.dot_general(
        xt_ref[...], w_ref[...],
        dimension_numbers=(((1,), (1,)), ((), ())),
        preferred_element_type=jnp.float32,
    )

    @pl.when(k == 0)
    def _():
        acc_ref[...] = partial

    @pl.when(k != 0)
    def _():
        acc_ref[...] += partial

    @pl.when(k == pl.num_programs(2) - 1)
    def _():
        o_ref[...] = (acc_ref[...] + b_ref[...].astype(jnp.float32)).astype(
            o_ref.dtype
        )


@functools.partial(jax.jit, static_argnames=("compute_dtype",))
def linear_forward(weight, x, bias, *, compute_dtype=None):
    """weight: (O, I), x: (I, N), bias: (O, 1) -> (O, N), matching W @ x + b."""
    O, I = weight.shape
    I2, N = x.shape
    assert I == I2, "input_size mismatch"
    assert bias.shape == (O, 1)

    out_dtype = x.dtype
    if compute_dtype is not None:
        # bf16 operands hit v6e/v7x MXU peak and halve weight HBM bytes; the
        # casts are skipped when the caller already stores bf16 (best practice,
        # since the astype is itself an extra HBM pass over W).
        if weight.dtype != compute_dtype:
            weight = weight.astype(compute_dtype)
        if x.dtype != compute_dtype:
            x = x.astype(compute_dtype)

    # Lane-dense internal layout: rows = batch, cols = out features.  Only x
    # (the small array) is transposed in the wrapper; weight stays native.
    xt = x.T                     # (N, I)
    b_row = bias.reshape(1, O)   # (1, O)

    x_b = jnp.dtype(x.dtype).itemsize
    w_b = jnp.dtype(weight.dtype).itemsize
    o_b = jnp.dtype(out_dtype).itemsize
    b_b = jnp.dtype(bias.dtype).itemsize
    use_scratch = jnp.dtype(out_dtype) != jnp.dtype(jnp.float32)
    pack = _sublane_pack(x.dtype, out_dtype)

    # Large default tiles (shrunk below only if VMEM budget is exceeded).
    tm = min(512, _round_up(N, pack))      # batch rows (sublane axis)
    tn = min(1024, _round_up(O, 128))      # output features (lane axis)
    tk = min(2048, _round_up(I, 128))      # reduction over input features

    def vmem_bytes(tm_, tn_, tk_):
        return (2 * tn_ * tk_ * w_b            # weight tile, double-buffered
                + 2 * tm_ * tk_ * x_b          # x tile, double-buffered
                + 2 * tm_ * tn_ * o_b          # out tile, double-buffered
                + 2 * tn_ * b_b                # bias tile (tiny)
                + (tm_ * tn_ * 4 if use_scratch else 0))

    # Shrink the reduction dim first (doesn't change HBM traffic), then tn, tm.
    while vmem_bytes(tm, tn, tk) > _VMEM_TILE_BUDGET and tk > 512:
        tk = max(512, _round_up(tk // 2, 128))
    while vmem_bytes(tm, tn, tk) > _VMEM_TILE_BUDGET and tn > 128:
        tn = max(128, _round_up(tn // 2, 128))
    while vmem_bytes(tm, tn, tk) > _VMEM_TILE_BUDGET and tm > pack:
        tm = max(pack, _round_up(tm // 2, pack))

    # v7x megacore: make sure at least one "parallel" axis has >=2 programs
    # when the problem is big enough to split cleanly.
    if (_round_up(N, tm) // tm == 1) and (_round_up(O, tn) // tn == 1):
        if tn % 256 == 0:
            tn //= 2
        elif tm % (2 * pack) == 0:
            tm //= 2

    N_pad = _round_up(N, tm)
    O_pad = _round_up(O, tn)
    I_pad = _round_up(I, tk)

    # Zero-pad only when needed; padding along the reduction dim contributes 0.
    if xt.shape != (N_pad, I_pad):
        xt = jnp.pad(xt, ((0, N_pad - N), (0, I_pad - I)))
    w_p = weight
    if w_p.shape != (O_pad, I_pad):
        w_p = jnp.pad(w_p, ((0, O_pad - O), (0, I_pad - I)))
    if b_row.shape != (1, O_pad):
        b_row = jnp.pad(b_row, ((0, 0), (0, O_pad - O)))

    grid = (N_pad // tm, O_pad // tn, I_pad // tk)

    kernel = _linear_kernel_acc if use_scratch else _linear_kernel_f32_out
    scratch = [pltpu.VMEM((tm, tn), jnp.float32)] if use_scratch else []

    y_pad = pl.pallas_call(
        kernel,
        out_shape=jax.ShapeDtypeStruct((N_pad, O_pad), out_dtype),
        grid=grid,
        in_specs=[
            pl.BlockSpec((tm, tk), lambda i, j, k: (i, k)),   # x.T tile
            pl.BlockSpec((tn, tk), lambda i, j, k: (j, k)),   # W tile, native (O, I)
            pl.BlockSpec((1, tn), lambda i, j, k: (0, j)),    # bias row tile (tiny)
        ],
        out_specs=pl.BlockSpec((tm, tn), lambda i, j, k: (i, j)),
        scratch_shapes=scratch,
        compiler_params=pltpu.CompilerParams(
            dimension_semantics=("parallel", "parallel", "arbitrary"),
            vmem_limit_bytes=_VMEM_LIMIT,
        ),
    )(xt, w_p, b_row)

    # Strip padding and return in the module's (output_size, batch) layout.
    return y_pad[:N, :O].T


if __name__ == "__main__":
    # Shapes consistent with the module: Linear(input_size=32, output_size=16),
    # batch of 8 column vectors (x is feature-major: (input_size, batch)).
    input_size = 32
    output_size = 16
    batch = 8

    key = jax.random.PRNGKey(0)
    kw, kb, kx = jax.random.split(key, 3)

    stdv = 1.0 / (input_size ** 0.5)
    weight = jax.random.uniform(
        kw, (output_size, input_size), dtype=jnp.float32, minval=-stdv, maxval=stdv
    )
    bias = jax.random.uniform(
        kb, (output_size, 1), dtype=jnp.float32, minval=-stdv, maxval=stdv
    )
    x = jax.random.normal(kx, (input_size, batch), dtype=jnp.float32)

    ref = weight @ x + bias   # same semantics as weight.mm(x).add(bias)

    # f32 path (no scratch: accumulates straight into the resident output tile).
    out = jax.block_until_ready(linear_forward(weight, x, bias))
    assert out.shape == (output_size, batch)
    assert jnp.allclose(out, ref, atol=1e-5, rtol=1e-5), "f32 mismatch vs reference"

    # bf16 operand / bf16 output path (exercises the f32-accumulator variant).
    x_bf16 = x.astype(jnp.bfloat16)
    out_bf16 = jax.block_until_ready(
        linear_forward(weight, x_bf16, bias, compute_dtype=jnp.bfloat16)
    )
    assert out_bf16.shape == (output_size, batch)
    assert out_bf16.dtype == jnp.bfloat16
    assert jnp.allclose(
        out_bf16.astype(jnp.float32), ref, atol=5e-2, rtol=5e-2
    ), "bf16 mismatch vs reference"

    print("KERNEL_OK")
</pallas_src>

<mosaic_0001>
module attributes {stable_mosaic.version = 11 : i64} {
  func.func @_linear_kernel_f32_out(%arg0: i32, %arg1: i32, %arg2: i32, %arg3: memref<8x128xf32, #tpu.memory_space<vmem>>, %arg4: memref<128x128xf32, #tpu.memory_space<vmem>>, %arg5: memref<1x128xf32, #tpu.memory_space<vmem>>, %arg6: memref<8x128xf32, #tpu.memory_space<vmem>>) attributes {dimension_semantics = [#tpu.dimension_semantics<parallel>, #tpu.dimension_semantics<parallel>, #tpu.dimension_semantics<arbitrary>], iteration_bounds = array<i64: 1, 1, 1>, scalar_prefetch = 0 : i64, scratch_operands = 0 : i64, tpu.core_type = #tpu.core_type<tc>, window_params = [{transform_indices = @transform_0, window_bounds = array<i64: 8, 128>}, {transform_indices = @transform_1, window_bounds = array<i64: 128, 128>}, {transform_indices = @transform_2, window_bounds = array<i64: 1, 128>}, {transform_indices = @transform_3, window_bounds = array<i64: 8, 128>}]} {
    %c0 = arith.constant 0 : index
    %c0_0 = arith.constant 0 : index
    %0 = vector.load %arg3[%c0, %c0_0] : memref<8x128xf32, #tpu.memory_space<vmem>>, vector<8x128xf32>
    %c0_1 = arith.constant 0 : index
    %c0_2 = arith.constant 0 : index
    %1 = vector.load %arg4[%c0_1, %c0_2] : memref<128x128xf32, #tpu.memory_space<vmem>>, vector<128x128xf32>
    %cst = arith.constant dense<0.000000e+00> : vector<8x128xf32>
    %2 = tpu.matmul %0, %1, %cst {dimension_numbers = #tpu.dot_dimension_numbers<[1], [1], [0], [0], [0, 0, 1, 0], [], []>} : vector<8x128xf32>, vector<128x128xf32>, vector<8x128xf32> -> vector<8x128xf32>
    %c0_i32 = arith.constant 0 : i32
    %3 = arith.cmpi eq, %arg2, %c0_i32 : i32
    %4 = arith.extui %3 : i1 to i32
    %c0_i32_3 = arith.constant 0 : i32
    %5 = arith.cmpi ne, %4, %c0_i32_3 : i32
    scf.if %5 {
      %c0_8 = arith.constant 0 : index
      %c0_9 = arith.constant 0 : index
      %12 = vector.load %arg6[%c0_8, %c0_9] : memref<8x128xf32, #tpu.memory_space<vmem>>, vector<8x128xf32>
      tpu.vector_store %arg6[%c0_8, %c0_9], %2 {strides = array<i32>} : memref<8x128xf32, #tpu.memory_space<vmem>>, vector<8x128xf32>,
    } else {
    }
    %c0_i32_4 = arith.constant 0 : i32
    %6 = arith.cmpi ne, %arg2, %c0_i32_4 : i32
    %7 = arith.extui %6 : i1 to i32
    %c0_i32_5 = arith.constant 0 : i32
    %8 = arith.cmpi ne, %7, %c0_i32_5 : i32
    scf.if %8 {
      %c0_8 = arith.constant 0 : index
      %c0_9 = arith.constant 0 : index
      %12 = vector.load %arg6[%c0_8, %c0_9] : memref<8x128xf32, #tpu.memory_space<vmem>>, vector<8x128xf32>
      %13 = arith.addf %12, %2 : vector<8x128xf32>
      %c0_10 = arith.constant 0 : index
      %c0_11 = arith.constant 0 : index
      %14 = vector.load %arg6[%c0_10, %c0_11] : memref<8x128xf32, #tpu.memory_space<vmem>>, vector<8x128xf32>
      tpu.vector_store %arg6[%c0_10, %c0_11], %13 {strides = array<i32>} : memref<8x128xf32, #tpu.memory_space<vmem>>, vector<8x128xf32>,
    } else {
    }
    %c0_i32_6 = arith.constant 0 : i32
    %9 = arith.cmpi eq, %arg2, %c0_i32_6 : i32
    %10 = arith.extui %9 : i1 to i32
    %c0_i32_7 = arith.constant 0 : i32
    %11 = arith.cmpi ne, %10, %c0_i32_7 : i32
    scf.if %11 {
      %c0_8 = arith.constant 0 : index
      %c0_9 = arith.constant 0 : index
      %12 = vector.load %arg6[%c0_8, %c0_9] : memref<8x128xf32, #tpu.memory_space<vmem>>, vector<8x128xf32>
      %c0_10 = arith.constant 0 : index
      %c0_11 = arith.constant 0 : index
      %13 = vector.load %arg5[%c0_10, %c0_11] : memref<1x128xf32, #tpu.memory_space<vmem>>, vector<1x128xf32>
      %14 = vector.broadcast %13 : vector<1x128xf32> to vector<8x128xf32>
      %15 = arith.addf %12, %14 : vector<8x128xf32>
      %c0_12 = arith.constant 0 : index
      %c0_13 = arith.constant 0 : index
      %16 = vector.load %arg6[%c0_12, %c0_13] : memref<8x128xf32, #tpu.memory_space<vmem>>, vector<8x128xf32>
      tpu.vector_store %arg6[%c0_12, %c0_13], %15 {strides = array<i32>} : memref<8x128xf32, #tpu.memory_space<vmem>>, vector<8x128xf32>,
    } else {
    }
    return
  }
  func.func @transform_0(%arg0: i32, %arg1: i32, %arg2: i32) -> (i32, i32) {
    %c0_i32 = arith.constant 0 : i32
    return %arg0, %arg2 : i32, i32
  }
  func.func @transform_1(%arg0: i32, %arg1: i32, %arg2: i32) -> (i32, i32) {
    %c0_i32 = arith.constant 0 : i32
    return %arg1, %arg2 : i32, i32
  }
  func.func @transform_2(%arg0: i32, %arg1: i32, %arg2: i32) -> (i32, i32) {
    %c0_i32 = arith.constant 0 : i32
    %c0_i32_0 = arith.constant 0 : i32
    return %c0_i32, %arg1 : i32, i32
  }
  func.func @transform_3(%arg0: i32, %arg1: i32, %arg2: i32) -> (i32, i32) {
    %c0_i32 = arith.constant 0 : i32
    return %arg0, %arg1 : i32, i32
  }
}

</mosaic_0001>

<llo_original>
// kernel: linear_forward.1
$region0: #{linear_forward.1}
  #allocation0 [shape = 'u32[]', space=smem, size = 0x4, offset = 0x4, fixed_abs, tag = 'smem constant byte address 0x4 - core index']
  #allocation1 [shape = 'u32[72,128]{1,0:T(1,128)}', space=vmem, size = 0x9000, scoped, tag = 'internal scratch']
  %s0 = inlined_call_operand.vmem [shape: f32[8,128], index: 0, kind: input, shape index: {}]
  %s1 = inlined_call_operand.vmem [shape: f32[128,128], index: 1, kind: input, shape index: {}]
  %s2 = inlined_call_operand.vmem [shape: f32[1,128], index: 2, kind: input, shape index: {}]
  %s3 = inlined_call_operand.vmem [shape: f32[8,128], index: 3, kind: output, shape index: {}]
  %s4 = sld [smem:[#allocation0]]
  $region34: #{linear_forward.1} parent=0
    _
  %s6 = ssub.s32 1, %s4
  %s7 = scalar_select 0, %s6, %s4
  // Predicated region
  $region2: #{linear_forward.1} parent=0 // pred_check
    _
  $region3: #{linear_forward.1} parent=0 // pred_check_branch
    %9 = sbr.rel (0) target = $region5
  $region4: #{linear_forward.1} parent=0 // pred_region
    _
  $region5: #{linear_forward.1} parent=0 // pred_fallthru
    _
  // Predicated region
  $region6: #{linear_forward.1} parent=0 // pred_check
    _
  $region7: #{linear_forward.1} parent=0 // pred_check_branch
    %11 = sbr.rel (0) target = $region9
  $region8: #{linear_forward.1} parent=0 // pred_region
    _
  $region9: #{linear_forward.1} parent=0 // pred_fallthru
    _
  // Predicated region
  $region10: #{linear_forward.1} parent=0 // pred_check
    _
  $region11: #{linear_forward.1} parent=0 // pred_check_branch
    %13 = sbr.rel (0) target = $region13
  $region12: #{linear_forward.1} parent=0 // pred_region
    _
  $region13: #{linear_forward.1} parent=0 // pred_fallthru
    _
  %v14 = vld [vmem:[%s0] sm:$0xff]
  %v15 = vld [vmem:[%s1] sm:$0xff]
  %v16 = vld [vmem:[%s1 + $0x8] sm:$0xff]
  %v17 = vld [vmem:[%s1 + $0x10] sm:$0xff]
  %v18 = vld [vmem:[%s1 + $0x18] sm:$0xff]
  %v19 = vld [vmem:[%s1 + $0x20] sm:$0xff]
  %v20 = vld [vmem:[%s1 + $0x28] sm:$0xff]
  %v21 = vld [vmem:[%s1 + $0x30] sm:$0xff]
  %v22 = vld [vmem:[%s1 + $0x38] sm:$0xff]
  %v23 = vld [vmem:[%s1 + $0x40] sm:$0xff]
  %v24 = vld [vmem:[%s1 + $0x48] sm:$0xff]
  %v25 = vld [vmem:[%s1 + $0x50] sm:$0xff]
  %v26 = vld [vmem:[%s1 + $0x58] sm:$0xff]
  %v27 = vld [vmem:[%s1 + $0x60] sm:$0xff]
  %v28 = vld [vmem:[%s1 + $0x68] sm:$0xff]
  %v29 = vld [vmem:[%s1 + $0x70] sm:$0xff]
  %v30 = vld [vmem:[%s1 + $0x78] sm:$0xff]
  %31 = vmatpush.xpose.msra.mxu0 %v30
  %32 = vmatpush.xpose.msra.mxu0 %v29
  %33 = vmatpush.xpose.msra.mxu0 %v28
  %34 = vmatpush.xpose.msra.mxu0 %v27
  %35 = vmatpush.xpose.msra.mxu0 %v26
  %36 = vmatpush.xpose.msra.mxu0 %v25
  %37 = vmatpush.xpose.msra.mxu0 %v24
  %38 = vmatpush.xpose.msra.mxu0 %v23
  %39 = vmatpush.xpose.msra.mxu0 %v22
  %40 = vmatpush.xpose.msra.mxu0 %v21
  %41 = vmatpush.xpose.msra.mxu0 %v20
  %42 = vmatpush.xpose.msra.mxu0 %v19
  %43 = vmatpush.xpose.msra.mxu0 %v18
  %44 = vmatpush.xpose.msra.mxu0 %v17
  %45 = vmatpush.xpose.msra.mxu0 %v16
  %46 = vmatpush.xpose.msra.mxu0 %v15
  %47 = vmatmul.f32.gmra.mxu0 %v14
  %v48 = vpop.f32.mrf.mxu0
  %v49 = vadd.f32 0.0, %v48
  %50 = vdwg.mxu0
  %p51 = scmp.eq.s32.totalorder 0, 0
  // Predicated region
  $region14: #{linear_forward.1} parent=0 // pred_check
    %p52 = pneg %p51
  $region15: #{linear_forward.1} parent=0 // pred_check_branch
    %54 = sbr.rel (%p52) target = $region17
  $region16: #{linear_forward.1} parent=0 // pred_region
    %55 = vst [vmem:[%s3] sm:$0xff] %v49
  $region17: #{linear_forward.1} parent=0 // pred_fallthru
    _
  %p56 = scmp.ne.s32.totalorder 0, 0
  // Predicated region
  $region18: #{linear_forward.1} parent=0 // pred_check
    %p57 = pneg %p56
  $region19: #{linear_forward.1} parent=0 // pred_check_branch
    %59 = sbr.rel (%p57) target = $region21
  $region20: #{linear_forward.1} parent=0 // pred_region
    %v60 = vld [vmem:[%s3] sm:$0xff]
    %v61 = vadd.f32 %v60, %v49
    %62 = vst [vmem:[%s3] sm:$0xff] %v61
  $region21: #{linear_forward.1} parent=0 // pred_fallthru
    _
  // Predicated region
  $region22: #{linear_forward.1} parent=0 // pred_check
    %p63 = pneg %p51
  $region23: #{linear_forward.1} parent=0 // pred_check_branch
    %65 = sbr.rel (%p63) target = $region25
  $region24: #{linear_forward.1} parent=0 // pred_region
    %v66 = vld [vmem:[%s3] sm:$0xff]
    %v67 = vld [vmem:[%s2] sm:$0x1]
    %v69 = vperm.slane %v67, 0
    %v71 = vadd.f32 %v66, %v69
    %72 = vst [vmem:[%s3] sm:$0xff] %v71
  $region25: #{linear_forward.1} parent=0 // pred_fallthru
    _
  // Predicated region
  $region26: #{linear_forward.1} parent=0 // pred_check
    _
  $region27: #{linear_forward.1} parent=0 // pred_check_branch
    %74 = sbr.rel (0) target = $region29
  $region28: #{linear_forward.1} parent=0 // pred_region
    _
  $region29: #{linear_forward.1} parent=0 // pred_fallthru
    _
  // Predicated region
  $region30: #{linear_forward.1} parent=0 // pred_check
    _
  $region31: #{linear_forward.1} parent=0 // pred_check_branch
    %76 = sbr.rel (0) target = $region33
  $region32: #{linear_forward.1} parent=0 // pred_region
    _
  $region33: #{linear_forward.1} parent=0 // pred_fallthru
    _

</llo_original>
